<compile_context>
chip_gen: v5e
topology: v5e:2x2
jax: 0.10.0
libtpu: 0.0.40
codegen_flags: <defaults>
</compile_context>

<pallas_src>
import functools
import math

import jax
import jax.numpy as jnp
from jax import lax
from jax.experimental import pallas as pl
from jax.experimental.pallas import tpu as pltpu


# ---------------------------------------------------------------------------
# Kernels
# ---------------------------------------------------------------------------

def _gaussian_noise_kernel_tpu(seed_ref, x_ref, o_ref, *, sigma):
    """TPU path: hardware PRNG, re-seeded per grid step -> independent tiles."""
    pltpu.prng_seed(seed_ref[0] + pl.program_id(0))
    z = pltpu.stateful_normal(x_ref.shape, jnp.float32)
    xv = x_ref[...].astype(jnp.float32)
    o_ref[...] = (xv * (1.0 + sigma * z)).astype(o_ref.dtype)


def _hash32(v):
    """lowbias32 integer finalizer (good avalanche); uint32 in / uint32 out."""
    v = v ^ (v >> 16)
    v = v * jnp.uint32(0x7FEB352D)
    v = v ^ (v >> 15)
    v = v * jnp.uint32(0x846CA68B)
    v = v ^ (v >> 16)
    return v


def _gaussian_noise_kernel_portable(seed_ref, x_ref, o_ref, *, sigma,
                                    block_rows, block_cols):
    """Portable path (no Mosaic PRNG): counter-based hash PRNG + Box-Muller.

    Keyed on the global element index, so the noise pattern is identical for
    any tiling ("grid-invariant") and every element is an independent draw.
    """
    seed = seed_ref[0].astype(jnp.uint32)
    row0 = lax.convert_element_type(pl.program_id(0), jnp.uint32) * jnp.uint32(block_rows)
    r = lax.broadcasted_iota(jnp.uint32, (block_rows, block_cols), 0)
    c = lax.broadcasted_iota(jnp.uint32, (block_rows, block_cols), 1)
    idx = (row0 + r) * jnp.uint32(block_cols) + c      # global element index
    base = idx * jnp.uint32(2)
    b1 = _hash32(_hash32(base) ^ seed)
    b2 = _hash32(_hash32(base + jnp.uint32(1)) ^ seed)
    # 24-bit uniforms strictly inside (0, 1).
    u1 = ((b1 >> 8).astype(jnp.float32) + 0.5) * jnp.float32(1.0 / 16777216.0)
    u2 = ((b2 >> 8).astype(jnp.float32) + 0.5) * jnp.float32(1.0 / 16777216.0)
    # Box-Muller -> standard normal.
    z = jnp.sqrt(-2.0 * jnp.log(u1)) * jnp.cos(jnp.float32(2.0 * math.pi) * u2)
    xv = x_ref[...].astype(jnp.float32)
    o_ref[...] = (xv * (1.0 + sigma * z)).astype(o_ref.dtype)


# ---------------------------------------------------------------------------
# Wrapper
# ---------------------------------------------------------------------------

def _round_up(n, m):
    return ((n + m - 1) // m) * m


def gaussian_noise(x, seed, *, sigma=0.1, is_relative_detach=True, training=True):
    """Forward pass of GaussianNoise.

    `is_relative_detach` only changes autograd behaviour in PyTorch (detach or
    not); the forward values are identical, so it is accepted but unused.
    """
    del is_relative_detach  # forward-value semantics identical either way
    if (not training) or sigma == 0:
        return x

    orig_shape = x.shape
    total = int(x.size)

    # Lane-dense 2D slab: last dim a large multiple of 128 (1024 for real
    # activation sizes, 128 for tiny demo inputs to avoid heavy padding).
    bn = 1024 if total >= 8 * 1024 else 128
    rows_needed = -(-total // bn)
    bm = min(512, _round_up(rows_needed, 8))     # block rows (<= 2 MiB f32 block)
    rows = _round_up(rows_needed, bm)
    grid = rows // bm

    flat = x.reshape(-1)
    padded = rows * bn
    if padded != total:
        flat = jnp.pad(flat, (0, padded - total))
    x2d = flat.reshape(rows, bn)

    seed_arr = jnp.asarray([seed], dtype=jnp.int32)

    on_tpu = jax.default_backend() == "tpu"
    if on_tpu:
        kernel = functools.partial(_gaussian_noise_kernel_tpu, sigma=float(sigma))
    else:
        kernel = functools.partial(_gaussian_noise_kernel_portable,
                                   sigma=float(sigma),
                                   block_rows=bm, block_cols=bn)

    pallas_kwargs = {}
    if on_tpu:
        # v7x: let the two TensorCores split the (independent) grid steps.
        pallas_kwargs["compiler_params"] = pltpu.CompilerParams(
            dimension_semantics=("parallel",))

    out2d = pl.pallas_call(
        kernel,
        out_shape=jax.ShapeDtypeStruct(x2d.shape, x2d.dtype),
        grid=(grid,),
        in_specs=[
            pl.BlockSpec(memory_space=pltpu.MemorySpace.SMEM),  # seed scalar
            pl.BlockSpec((bm, bn), lambda i: (i, 0)),
        ],
        out_specs=pl.BlockSpec((bm, bn), lambda i: (i, 0)),
        **pallas_kwargs,
    )(seed_arr, x2d)

    out_flat = out2d.reshape(-1)
    if padded != total:
        out_flat = out_flat[:total]
    return out_flat.reshape(orig_shape)


# ---------------------------------------------------------------------------
# Demo / sanity checks
# ---------------------------------------------------------------------------

if __name__ == "__main__":
    key = jax.random.PRNGKey(0)
    # Small NCHW input consistent with a conv-feature-map use of this module.
    x = jax.random.normal(key, (2, 4, 16, 16), dtype=jnp.float32)

    sigma = 0.1
    out = gaussian_noise(x, seed=1234, sigma=sigma, training=True)
    out = jax.block_until_ready(out)

    assert out.shape == x.shape and out.dtype == x.dtype
    assert bool(jnp.all(jnp.isfinite(out)))
    assert not bool(jnp.allclose(out, x))

    # Recover the standard-normal draws: out = x * (1 + sigma*z)  =>  z.
    z = (out / x - 1.0) / sigma
    z_mean = float(jnp.mean(z))
    z_std = float(jnp.std(z))
    assert abs(z_mean) < 0.3, f"noise mean off: {z_mean}"
    assert 0.5 < z_std < 1.5, f"noise std off: {z_std}"

    # Eval mode / sigma == 0 are exact identities.
    out_eval = jax.block_until_ready(gaussian_noise(x, seed=1234, training=False))
    assert bool(jnp.array_equal(out_eval, x))
    out_zero = jax.block_until_ready(
        gaussian_noise(x, seed=1234, sigma=0.0, training=True))
    assert bool(jnp.array_equal(out_zero, x))

    print("KERNEL_OK")
</pallas_src>

<mosaic_0001>
module attributes {stable_mosaic.version = 11 : i64} {
  func.func @_gaussian_noise_kernel_portable(%arg0: i32, %arg1: memref<1xi32, #tpu.memory_space<smem>>, %arg2: memref<16x128xf32, #tpu.memory_space<vmem>>, %arg3: memref<16x128xf32, #tpu.memory_space<vmem>>) attributes {dimension_semantics = [#tpu.dimension_semantics<arbitrary>], iteration_bounds = array<i64: 1>, scalar_prefetch = 0 : i64, scratch_operands = 0 : i64, tpu.core_type = #tpu.core_type<tc>, window_params = [{transform_indices = @transform_0, window_bounds = array<i64: 1>}, {transform_indices = @transform_1, window_bounds = array<i64: 16, 128>}, {transform_indices = @transform_2, window_bounds = array<i64: 16, 128>}]} {
    %c0 = arith.constant 0 : index
    %0 = memref.load %arg1[%c0] : memref<1xi32, #tpu.memory_space<smem>>
    %c16_i32 = arith.constant 16 : i32
    %1 = arith.muli %arg0, %c16_i32 : i32
    %2 = tpu.iota {dimensions = array<i32: 0>} : vector<16x128xi32>
    %3 = tpu.iota {dimensions = array<i32: 1>} : vector<16x128xi32>
    %4 = vector.broadcast %1 : i32 to vector<16x128xi32>
    %5 = arith.addi %4, %2 : vector<16x128xi32>
    %c128_i32 = arith.constant 128 : i32
    %6 = vector.broadcast %c128_i32 : i32 to vector<16x128xi32>
    %7 = arith.muli %5, %6 : vector<16x128xi32>
    %8 = arith.addi %7, %3 : vector<16x128xi32>
    %c2_i32 = arith.constant 2 : i32
    %9 = vector.broadcast %c2_i32 : i32 to vector<16x128xi32>
    %10 = arith.muli %8, %9 : vector<16x128xi32>
    %c16_i32_0 = arith.constant 16 : i32
    %11 = vector.broadcast %c16_i32_0 : i32 to vector<16x128xi32>
    %12 = arith.shrui %10, %11 : vector<16x128xi32>
    %13 = arith.xori %10, %12 : vector<16x128xi32>
    %c2146121005_i32 = arith.constant 2146121005 : i32
    %14 = vector.broadcast %c2146121005_i32 : i32 to vector<16x128xi32>
    %15 = arith.muli %13, %14 : vector<16x128xi32>
    %c15_i32 = arith.constant 15 : i32
    %16 = vector.broadcast %c15_i32 : i32 to vector<16x128xi32>
    %17 = arith.shrui %15, %16 : vector<16x128xi32>
    %18 = arith.xori %15, %17 : vector<16x128xi32>
    %c-2073254261_i32 = arith.constant -2073254261 : i32
    %19 = vector.broadcast %c-2073254261_i32 : i32 to vector<16x128xi32>
    %20 = arith.muli %18, %19 : vector<16x128xi32>
    %c16_i32_1 = arith.constant 16 : i32
    %21 = vector.broadcast %c16_i32_1 : i32 to vector<16x128xi32>
    %22 = arith.shrui %20, %21 : vector<16x128xi32>
    %23 = arith.xori %20, %22 : vector<16x128xi32>
    %24 = vector.broadcast %0 : i32 to vector<16x128xi32>
    %25 = arith.xori %23, %24 : vector<16x128xi32>
    %c16_i32_2 = arith.constant 16 : i32
    %26 = vector.broadcast %c16_i32_2 : i32 to vector<16x128xi32>
    %27 = arith.shrui %25, %26 : vector<16x128xi32>
    %28 = arith.xori %25, %27 : vector<16x128xi32>
    %c2146121005_i32_3 = arith.constant 2146121005 : i32
    %29 = vector.broadcast %c2146121005_i32_3 : i32 to vector<16x128xi32>
    %30 = arith.muli %28, %29 : vector<16x128xi32>
    %c15_i32_4 = arith.constant 15 : i32
    %31 = vector.broadcast %c15_i32_4 : i32 to vector<16x128xi32>
    %32 = arith.shrui %30, %31 : vector<16x128xi32>
    %33 = arith.xori %30, %32 : vector<16x128xi32>
    %c-2073254261_i32_5 = arith.constant -2073254261 : i32
    %34 = vector.broadcast %c-2073254261_i32_5 : i32 to vector<16x128xi32>
    %35 = arith.muli %33, %34 : vector<16x128xi32>
    %c16_i32_6 = arith.constant 16 : i32
    %36 = vector.broadcast %c16_i32_6 : i32 to vector<16x128xi32>
    %37 = arith.shrui %35, %36 : vector<16x128xi32>
    %38 = arith.xori %35, %37 : vector<16x128xi32>
    %c1_i32 = arith.constant 1 : i32
    %39 = vector.broadcast %c1_i32 : i32 to vector<16x128xi32>
    %40 = arith.addi %10, %39 : vector<16x128xi32>
    %c16_i32_7 = arith.constant 16 : i32
    %41 = vector.broadcast %c16_i32_7 : i32 to vector<16x128xi32>
    %42 = arith.shrui %40, %41 : vector<16x128xi32>
    %43 = arith.xori %40, %42 : vector<16x128xi32>
    %c2146121005_i32_8 = arith.constant 2146121005 : i32
    %44 = vector.broadcast %c2146121005_i32_8 : i32 to vector<16x128xi32>
    %45 = arith.muli %43, %44 : vector<16x128xi32>
    %c15_i32_9 = arith.constant 15 : i32
    %46 = vector.broadcast %c15_i32_9 : i32 to vector<16x128xi32>
    %47 = arith.shrui %45, %46 : vector<16x128xi32>
    %48 = arith.xori %45, %47 : vector<16x128xi32>
    %c-2073254261_i32_10 = arith.constant -2073254261 : i32
    %49 = vector.broadcast %c-2073254261_i32_10 : i32 to vector<16x128xi32>
    %50 = arith.muli %48, %49 : vector<16x128xi32>
    %c16_i32_11 = arith.constant 16 : i32
    %51 = vector.broadcast %c16_i32_11 : i32 to vector<16x128xi32>
    %52 = arith.shrui %50, %51 : vector<16x128xi32>
    %53 = arith.xori %50, %52 : vector<16x128xi32>
    %54 = vector.broadcast %0 : i32 to vector<16x128xi32>
    %55 = arith.xori %53, %54 : vector<16x128xi32>
    %c16_i32_12 = arith.constant 16 : i32
    %56 = vector.broadcast %c16_i32_12 : i32 to vector<16x128xi32>
    %57 = arith.shrui %55, %56 : vector<16x128xi32>
    %58 = arith.xori %55, %57 : vector<16x128xi32>
    %c2146121005_i32_13 = arith.constant 2146121005 : i32
    %59 = vector.broadcast %c2146121005_i32_13 : i32 to vector<16x128xi32>
    %60 = arith.muli %58, %59 : vector<16x128xi32>
    %c15_i32_14 = arith.constant 15 : i32
    %61 = vector.broadcast %c15_i32_14 : i32 to vector<16x128xi32>
    %62 = arith.shrui %60, %61 : vector<16x128xi32>
    %63 = arith.xori %60, %62 : vector<16x128xi32>
    %c-2073254261_i32_15 = arith.constant -2073254261 : i32
    %64 = vector.broadcast %c-2073254261_i32_15 : i32 to vector<16x128xi32>
    %65 = arith.muli %63, %64 : vector<16x128xi32>
    %c16_i32_16 = arith.constant 16 : i32
    %66 = vector.broadcast %c16_i32_16 : i32 to vector<16x128xi32>
    %67 = arith.shrui %65, %66 : vector<16x128xi32>
    %68 = arith.xori %65, %67 : vector<16x128xi32>
    %c8_i32 = arith.constant 8 : i32
    %69 = vector.broadcast %c8_i32 : i32 to vector<16x128xi32>
    %70 = arith.shrui %38, %69 : vector<16x128xi32>
    %71 = arith.uitofp %70 : vector<16x128xi32> to vector<16x128xf32>
    %cst = arith.constant 5.000000e-01 : f32
    %72 = vector.broadcast %cst : f32 to vector<16x128xf32>
    %73 = arith.addf %71, %72 : vector<16x128xf32>
    %cst_17 = arith.constant 5.96046448E-8 : f32
    %74 = vector.broadcast %cst_17 : f32 to vector<16x128xf32>
    %75 = arith.mulf %73, %74 : vector<16x128xf32>
    %c8_i32_18 = arith.constant 8 : i32
    %76 = vector.broadcast %c8_i32_18 : i32 to vector<16x128xi32>
    %77 = arith.shrui %68, %76 : vector<16x128xi32>
    %78 = arith.uitofp %77 : vector<16x128xi32> to vector<16x128xf32>
    %cst_19 = arith.constant 5.000000e-01 : f32
    %79 = vector.broadcast %cst_19 : f32 to vector<16x128xf32>
    %80 = arith.addf %78, %79 : vector<16x128xf32>
    %cst_20 = arith.constant 5.96046448E-8 : f32
    %81 = vector.broadcast %cst_20 : f32 to vector<16x128xf32>
    %82 = arith.mulf %80, %81 : vector<16x128xf32>
    %83 = math.log %75 : vector<16x128xf32>
    %cst_21 = arith.constant -2.000000e+00 : f32
    %84 = vector.broadcast %cst_21 : f32 to vector<16x128xf32>
    %85 = arith.mulf %84, %83 : vector<16x128xf32>
    %86 = math.sqrt %85 : vector<16x128xf32>
    %cst_22 = arith.constant 6.28318548 : f32
    %87 = vector.broadcast %cst_22 : f32 to vector<16x128xf32>
    %88 = arith.mulf %87, %82 : vector<16x128xf32>
    %89 = math.cos %88 : vector<16x128xf32>
    %90 = arith.mulf %86, %89 : vector<16x128xf32>
    %c0_23 = arith.constant 0 : index
    %c0_24 = arith.constant 0 : index
    %91 = vector.load %arg2[%c0_23, %c0_24] : memref<16x128xf32, #tpu.memory_space<vmem>>, vector<16x128xf32>
    %cst_25 = arith.constant 1.000000e-01 : f32
    %92 = vector.broadcast %cst_25 : f32 to vector<16x128xf32>
    %93 = arith.mulf %92, %90 : vector<16x128xf32>
    %cst_26 = arith.constant 1.000000e+00 : f32
    %94 = vector.broadcast %cst_26 : f32 to vector<16x128xf32>
    %95 = arith.addf %94, %93 : vector<16x128xf32>
    %96 = arith.mulf %91, %95 : vector<16x128xf32>
    %c0_27 = arith.constant 0 : index
    %c0_28 = arith.constant 0 : index
    %97 = vector.load %arg3[%c0_27, %c0_28] : memref<16x128xf32, #tpu.memory_space<vmem>>, vector<16x128xf32>
    tpu.vector_store %arg3[%c0_27, %c0_28], %96 {strides = array<i32>} : memref<16x128xf32, #tpu.memory_space<vmem>>, vector<16x128xf32>,
    return
  }
  func.func @transform_0(%arg0: i32) -> i32 {
    %c0_i32 = arith.constant 0 : i32
    %c0_i32_0 = arith.constant 0 : i32
    return %c0_i32 : i32
  }
  func.func @transform_1(%arg0: i32) -> (i32, i32) {
    %c0_i32 = arith.constant 0 : i32
    %c0_i32_0 = arith.constant 0 : i32
    return %arg0, %c0_i32 : i32, i32
  }
  func.func @transform_2(%arg0: i32) -> (i32, i32) {
    %c0_i32 = arith.constant 0 : i32
    %c0_i32_0 = arith.constant 0 : i32
    return %arg0, %c0_i32 : i32, i32
  }
}

</mosaic_0001>

<llo_original>
// kernel: tpu_custom_call.1
$region0: #{tpu_custom_call.1}
  #allocation0 [shape = 'u32[]', space=smem, size = 0x4, offset = 0x4, fixed_abs, tag = 'smem constant byte address 0x4 - core index']
  #allocation1 [shape = 'u32[72,128]{1,0:T(1,128)}', space=vmem, size = 0x9000, scoped, tag = 'internal scratch']
  #allocation2 [shape = 's32[1]{0:T(128)S(6)}', space=smem, size = 0x200, scoped, tag = 'scoped memory for tpu_custom_call.1']
  %s0 = inlined_call_operand.<no memory space> [shape: s32[1], index: 0, kind: input, shape index: {}]
  %s1 = inlined_call_operand.hbm [shape: f32[16,128], index: 1, kind: input, shape index: {}]
  %s2 = inlined_call_operand.hbm [shape: f32[16,128], index: 2, kind: output, shape index: {}]
  %s3 = sld [smem:[#allocation0]]
  $region22: #{tpu_custom_call.1} parent=0
    _
  %s5 = ssub.s32 1, %s3
  %s6 = scalar_select 0, %s5, %s3
  %7 = sst [smem:[#allocation2]] %s0
  $region1: #{tpu_custom_call.1} parent=0
    #allocation3 [shape = 'u8[8192]{0}', space=vmem, size = 0x2000, scoped, tag = 'input window, operand 1, single buffered']
    #allocation4 [shape = 's32[1]{0}', space=sflag, size = 0x4, scoped, tag = 'scoped memory for tpu_custom_call.1']
    #allocation5 [shape = 's32[1]{0}', space=sflag, size = 0x4, scoped, tag = 'scoped memory for tpu_custom_call.1']
    #allocation6 [shape = 'u8[8192]{0}', space=vmem, size = 0x2000, scoped, tag = 'output window, operand 0, single buffered']
    %8 = vsyncpa [#allocation4], 0
    %9 = vsyncpa [#allocation5], 0
    // Predicated region
    $region2: #{tpu_custom_call.1} parent=1 // pred_check
      _
    $region3: #{tpu_custom_call.1} parent=1 // pred_check_branch
      %11 = sbr.rel (0) target = $region5
    $region4: #{tpu_custom_call.1} parent=1 // pred_region
      _
    $region5: #{tpu_custom_call.1} parent=1 // pred_fallthru
      _
    // Predicated region
    $region6: #{tpu_custom_call.1} parent=1 // pred_check
      _
    $region7: #{tpu_custom_call.1} parent=1 // pred_check_branch
      %13 = sbr.rel (0) target = $region9
    $region8: #{tpu_custom_call.1} parent=1 // pred_region
      %15 = vsyncadd [#allocation4], 0
      %s16 = sshll.u32 %s1, 4
      %s17 = int_to_ptr.hbm [resolvable:$true] %s16
      %s18 = sshll.u32 [#allocation3], 4
      %s19 = int_to_ptr.vmem [resolvable:$true] %s18
      %24 = dma.hbm_to_vmem [thread:$0]  %s17, 256, %s19, [#allocation4], 128, 128, 8
    $region9: #{tpu_custom_call.1} parent=1 // pred_fallthru
      _
    // Predicated region
    $region10: #{tpu_custom_call.1} parent=1 // pred_check
      _
    $region11: #{tpu_custom_call.1} parent=1 // pred_check_branch
      %26 = sbr.rel (0) target = $region13
    $region12: #{tpu_custom_call.1} parent=1 // pred_region
      %28 = dma.done [#allocation4], 256
    $region13: #{tpu_custom_call.1} parent=1 // pred_fallthru
      _
    %s29 = sld [smem:[#allocation2]]
    %s30 = smul.u32 0, 16
    %v31 = vlaneseq
    %v32 = vshrl.u32 %v31, 7
    %v33 = vadd.s32 %v32, 8
    %v34 = vlaneseq
    %v35 = vand.u32 %v34, 127
    %v36 = vstv %s30
    %v37 = vadd.s32 %v36, %v32
    %v38 = vadd.s32 %v36, %v33
    %v39 = vmul.u32 %v37, 128
    %v40 = vmul.u32 %v38, 128
    %v41 = vadd.s32 %v39, %v35
    %v42 = vadd.s32 %v40, %v35
    %v43 = vmul.u32 %v41, 2
    %v44 = vmul.u32 %v42, 2
    %v45 = vshrl.u32 %v43, 16
    %v46 = vshrl.u32 %v44, 16
    %v47 = vxor.u32 %v43, %v45
    %v48 = vxor.u32 %v44, %v46
    %v49 = vmul.u32 %v47, 2146121005
    %v50 = vmul.u32 %v48, 2146121005
    %v51 = vshrl.u32 %v49, 15
    %v52 = vshrl.u32 %v50, 15
    %v53 = vxor.u32 %v49, %v51
    %v54 = vxor.u32 %v50, %v52
    %v55 = vmul.u32 %v53, 2221713035
    %v56 = vmul.u32 %v54, 2221713035
    %v57 = vshrl.u32 %v55, 16
    %v58 = vshrl.u32 %v56, 16
    %v59 = vxor.u32 %v55, %v57
    %v60 = vxor.u32 %v56, %v58
    %v61 = vstv %s29
    %v62 = vxor.u32 %v59, %v61
    %v63 = vxor.u32 %v60, %v61
    %v64 = vshrl.u32 %v62, 16
    %v65 = vshrl.u32 %v63, 16
    %v66 = vxor.u32 %v62, %v64
    %v67 = vxor.u32 %v63, %v65
    %v68 = vmul.u32 %v66, 2146121005
    %v69 = vmul.u32 %v67, 2146121005
    %v70 = vshrl.u32 %v68, 15
    %v71 = vshrl.u32 %v69, 15
    %v72 = vxor.u32 %v68, %v70
    %v73 = vxor.u32 %v69, %v71
    %v74 = vmul.u32 %v72, 2221713035
    %v75 = vmul.u32 %v73, 2221713035
    %v76 = vshrl.u32 %v74, 16
    %v77 = vshrl.u32 %v75, 16
    %v78 = vxor.u32 %v74, %v76
    %v79 = vxor.u32 %v75, %v77
    %v80 = vadd.s32 %v43, 1
    %v81 = vadd.s32 %v44, 1
    %v82 = vshrl.u32 %v80, 16
    %v83 = vshrl.u32 %v81, 16
    %v84 = vxor.u32 %v80, %v82
    %v85 = vxor.u32 %v81, %v83
    %v86 = vmul.u32 %v84, 2146121005
    %v87 = vmul.u32 %v85, 2146121005
    %v88 = vshrl.u32 %v86, 15
    %v89 = vshrl.u32 %v87, 15
    %v90 = vxor.u32 %v86, %v88
    %v91 = vxor.u32 %v87, %v89
    %v92 = vmul.u32 %v90, 2221713035
    %v93 = vmul.u32 %v91, 2221713035
    %v94 = vshrl.u32 %v92, 16
    %v95 = vshrl.u32 %v93, 16
    %v96 = vxor.u32 %v92, %v94
    %v97 = vxor.u32 %v93, %v95
    %v98 = vxor.u32 %v96, %v61
    %v99 = vxor.u32 %v97, %v61
    %v100 = vshrl.u32 %v98, 16
    %v101 = vshrl.u32 %v99, 16
    %v102 = vxor.u32 %v98, %v100
    %v103 = vxor.u32 %v99, %v101
    %v104 = vmul.u32 %v102, 2146121005
    %v105 = vmul.u32 %v103, 2146121005
    %v106 = vshrl.u32 %v104, 15
    %v107 = vshrl.u32 %v105, 15
    %v108 = vxor.u32 %v104, %v106
    %v109 = vxor.u32 %v105, %v107
    %v110 = vmul.u32 %v108, 2221713035
    %v111 = vmul.u32 %v109, 2221713035
    %v112 = vshrl.u32 %v110, 16
    %v113 = vshrl.u32 %v111, 16
    %v114 = vxor.u32 %v110, %v112
    %v115 = vxor.u32 %v111, %v113
    %v116 = vshrl.u32 %v78, 8
    %v117 = vshrl.u32 %v79, 8
    %v118 = vshrl.u32 %v116, 16
    %v119 = vand.u32 %v116, 65535
    %v120 = vcvt.s32.f32 %v118
    %v121 = vmul.f32 %v120, 65536.0
    %v122 = vcvt.s32.f32 %v119
    %v123 = vadd.f32 %v121, %v122
    %v124 = vshrl.u32 %v117, 16
    %v125 = vand.u32 %v117, 65535
    %v126 = vcvt.s32.f32 %v124
    %v127 = vmul.f32 %v126, 65536.0
    %v128 = vcvt.s32.f32 %v125
    %v129 = vadd.f32 %v127, %v128
    %v130 = vadd.f32 %v123, 0.5
    %v131 = vadd.f32 %v129, 0.5
    %v132 = vmul.f32 %v130, 5.9604645e-08
    %v133 = vmul.f32 %v131, 5.9604645e-08
    %v134 = vshrl.u32 %v114, 8
    %v135 = vshrl.u32 %v115, 8
    %v136 = vshrl.u32 %v134, 16
    %v137 = vand.u32 %v134, 65535
    %v138 = vcvt.s32.f32 %v136
    %v139 = vmul.f32 %v138, 65536.0
    %v140 = vcvt.s32.f32 %v137
    %v141 = vadd.f32 %v139, %v140
    %v142 = vshrl.u32 %v135, 16
    %v143 = vand.u32 %v135, 65535
    %v144 = vcvt.s32.f32 %v142
    %v145 = vmul.f32 %v144, 65536.0
    %v146 = vcvt.s32.f32 %v143
    %v147 = vadd.f32 %v145, %v146
    %v148 = vadd.f32 %v141, 0.5
    %v149 = vadd.f32 %v147, 0.5
    %v150 = vmul.f32 %v148, 5.9604645e-08
    %v151 = vmul.f32 %v149, 5.9604645e-08
    %v152 = vlog2.pop %v132
    %v153 = vmul.f32 %v152, 0.6931472
    %v154 = vlog2.pop %v133
    %v155 = vmul.f32 %v154, 0.6931472
    %v156 = vmul.f32 %v153, -2.0
    %v157 = vmul.f32 %v155, -2.0
    %v158 = vrsqrt.pop %v156
    %v159 = vmul.f32 %v158, %v156
    %v160 = vmul.f32 %v159, %v158
    %v161 = vmul.f32 0.5, %v160
    %v162 = vsub.f32 1.5, %v161
    %v163 = vmul.f32 %v158, %v162
    %v164 = vmul.f32 %v156, %v163
    %vm165 = vcmp.eq.f32.partialorder %v156, inf
    %v166 = vsel %vm165, %v156, %v164
    %vm167 = vcmp.eq.f32.partialorder %v156, 0.0
    %v168 = vand.u32 %v156, 2147483648
    %v169 = vsel %vm167, %v168, %v166
    %v170 = vrsqrt.pop %v157
    %v171 = vmul.f32 %v170, %v157
    %v172 = vmul.f32 %v171, %v170
    %v173 = vmul.f32 0.5, %v172
    %v174 = vsub.f32 1.5, %v173
    %v175 = vmul.f32 %v170, %v174
    %v176 = vmul.f32 %v157, %v175
    %vm177 = vcmp.eq.f32.partialorder %v157, inf
    %v178 = vsel %vm177, %v157, %v176
    %vm179 = vcmp.eq.f32.partialorder %v157, 0.0
    %v180 = vand.u32 %v157, 2147483648
    %v181 = vsel %vm179, %v180, %v178
    %v182 = vmul.f32 %v150, 6.2831855
    %v183 = vmul.f32 %v151, 6.2831855
    %v184 = vand.u32 2147483647, %v182
    %vm185 = vcmp.le.f32.partialorder %v184, 0.7853982
    %vm186 = vcmp.lt.s32.totalorder %v182, 0
    %v187 = vand.u32 %v182, 2139095040
    %v188 = vshrl.u32 %v187, 23
    %v189 = vsub.s32 %v188, 127
    %v190 = vand.u32 2147483647, %v182
    %v191 = vand.u32 %v190, 8388607
    %v192 = vor.u32 %v191, 8388608
    %v193 = vsub.s32 0, %v192
    %v194 = vadd.s32 %v189, 1
    %vm195 = vcmp.gt.s32.totalorder %v194, 0
    %v196 = vsel %vm195, %v194, 0
    %v197 = vshrl.u32 %v196, 5
    %v198 = vand.u32 %v196, 31
    %v199 = vsub.s32 32, %v198
    %v200 = vshrl.u32 683565275, %v199
    %v201 = vshll.u32 683565275, %v198
    %v202 = vshrl.u32 2475754826, %v199
    %v203 = vor.u32 %v201, %v202
    %v204 = vshll.u32 2475754826, %v198
    %v205 = vshrl.u32 2131351028, %v199
    %v206 = vor.u32 %v204, %v205
    %v207 = vshll.u32 2131351028, %v198
    %v208 = vshrl.u32 2102212464, %v199
    %v209 = vor.u32 %v207, %v208
    %v210 = vshll.u32 2102212464, %v198
    %v211 = vshrl.u32 920167782, %v199
    %v212 = vor.u32 %v210, %v211
    %v213 = vshll.u32 920167782, %v198
    %v214 = vshrl.u32 1326507024, %v199
    %v215 = vor.u32 %v213, %v214
    %vm216 = vcmp.lt.s32.totalorder %v197, 1
    %vm217 = vcmp.lt.s32.totalorder %v197, 2
    %vm218 = vcmp.lt.s32.totalorder %v197, 3
    %vm219 = vcmp.lt.s32.totalorder %v197, 4
    %v220 = vsel %vm216, %v200, %v203
    %v221 = vsel %vm219, %v209, 2102212464
    %v222 = vsel %vm218, %v206, %v221
    %v223 = vsel %vm217, %v220, %v222
    %v224 = vsel %vm216, %v203, %v206
    %v225 = vsel %vm219, %v212, 920167782
    %v226 = vsel %vm218, %v209, %v225
    %v227 = vsel %vm217, %v224, %v226
    %v228 = vsel %vm216, %v206, %v209
    %v229 = vsel %vm219, %v215, 1326507024
    %v230 = vsel %vm218, %v212, %v229
    %v231 = vsel %vm217, %v228, %v230
    %v232 = vshll.u32 %v192, 8
    %v233 = vand.u32 %v232, 65535
    %v234 = vshrl.u32 %v232, 16
    %v235 = vand.u32 %v231, 65535
    %v236 = vshrl.u32 %v231, 16
    %v237 = vmul.u32 %v233, %v235
    %v238 = vmul.u32 %v233, %v236
    %v239 = vmul.u32 %v234, %v235
    %v240 = vmul.u32 %v234, %v236
    %v241 = vshll.u32 %v238, 16
    %v242 = vshrl.u32 %v238, 16
    %v243 = vshll.u32 %v239, 16
    %v244 = vshrl.u32 %v239, 16
    %vm245 = vc.u32 %v237, %v241
    %v246 = vsel %vm245, 1, 0
    %v247 = vadd.s32 %v237, %v241
    %v248 = vadd.s32 %v240, %v246
    %vm249 = vc.u32 %v247, %v243
    %v250 = vsel %vm249, 1, 0
    %v251 = vadd.s32 %v247, %v243
    %v252 = vadd.s32 %v248, %v250
    %v253 = vadd.s32 %v252, %v242
    %v254 = vadd.s32 %v253, %v244
    %v255 = vand.u32 %v232, 65535
    %v256 = vshrl.u32 %v232, 16
    %v257 = vand.u32 %v227, 65535
    %v258 = vshrl.u32 %v227, 16
    %v259 = vmul.u32 %v255, %v257
    %v260 = vmul.u32 %v255, %v258
    %v261 = vmul.u32 %v256, %v257
    %v262 = vmul.u32 %v256, %v258
    %v263 = vshll.u32 %v260, 16
    %v264 = vshrl.u32 %v260, 16
    %v265 = vshll.u32 %v261, 16
    %v266 = vshrl.u32 %v261, 16
    %vm267 = vc.u32 %v259, %v263
    %v268 = vsel %vm267, 1, 0
    %v269 = vadd.s32 %v259, %v263
    %v270 = vadd.s32 %v262, %v268
    %vm271 = vc.u32 %v269, %v265
    %v272 = vsel %vm271, 1, 0
    %v273 = vadd.s32 %v269, %v265
    %v274 = vadd.s32 %v270, %v272
    %v275 = vadd.s32 %v274, %v264
    %v276 = vadd.s32 %v275, %v266
    %v277 = vmul.u32 %v232, %v223
    %v278 = vadd.s32 %v254, %v273
    %vm279 = vc.u32 %v254, %v273
    %v280 = vadd.s32 %v276, 1
    %v281 = vsel %vm279, %v280, %v276
    %v282 = vadd.s32 %v277, %v281
    %v283 = vadd.s32 %v282, 536870912
    %v284 = vshrl.u32 %v283, 30
    %v285 = vshll.u32 %v284, 30
    %v286 = vsub.s32 %v282, %v285
    %vm287 = vcmp.lt.s32.totalorder %v286, 0
    %v288 = vsub.s32 0, %v286
    %v289 = vsel %vm287, %v288, %v286
    %v290 = vclz %v289
    %v291 = vsub.s32 %v290, 2
    %vm292 = vcmp.gt.s32.totalorder 0, %v291
    %v293 = vsel %vm292, 0, %v291
    %v294 = vsub.s32 32, %v293
    %v295 = vshll.u32 %v286, %v293
    %v296 = vshrl.u32 %v278, %v294
    %v297 = vor.u32 %v295, %v296
    %v298 = vsub.s32 4294967266, %v293
    %v299 = vadd.s32 %v298, 127
    %v300 = vshll.u32 %v299, 23
    %v301 = vor.u32 4788187, %v300
    %v302 = vand.u32 2147483647, %v301
    %v304 = vcvt.s32.f32 %v297
    %v305 = vmul.f32 %v304, %v302
    %v306 = vxor.u32 %v305, 2147483648
    %v307 = vsel %vm186, %v306, %v305
    %v308 = vsub.s32 4, %v284
    %v309 = vsel %vm186, %v308, %v284
    %v310 = vsel %vm185, %v182, %v307
    %v311 = vsel %vm185, 0, %v309
    %v312 = vmul.f32 %v310, %v310
    %v313 = vmul.f32 %v312, -0.001358992
    %v314 = vadd.f32 %v313, 0.041655596
    %v315 = vmul.f32 %v312, %v314
    %v316 = vadd.f32 %v315, -0.4999988
    %v317 = vmul.f32 %v312, %v316
    %v318 = vadd.f32 1.0, %v317
    %v319 = vmul.f32 %v310, %v310
    %v320 = vmul.f32 %v319, -0.00019511016
    %v321 = vadd.f32 %v320, 0.008332121
    %v322 = vmul.f32 %v319, %v321
    %v323 = vadd.f32 %v322, -0.16666654
    %v324 = vmul.f32 %v319, %v323
    %v325 = vadd.f32 %v324, 1.0
    %v326 = vmul.f32 %v325, %v310
    %vm327 = vweird.f32 %v182
    %v328 = vand.u32 %v311, 3
    %vm329 = vcmp.lt.s32.totalorder %v328, 2
    %vm330 = vcmp.eq.s32.totalorder %v328, 0
    %v331 = vxor.u32 %v326, 2147483648
    %v332 = vsel %vm330, %v318, %v331
    %vm333 = vcmp.eq.s32.totalorder %v328, 2
    %v334 = vxor.u32 %v318, 2147483648
    %v335 = vsel %vm333, %v334, %v326
    %v336 = vsel %vm329, %v332, %v335
    %v337 = vsel %vm327, nan, %v336
    %v338 = vand.u32 2147483647, %v183
    %vm339 = vcmp.le.f32.partialorder %v338, 0.7853982
    %vm340 = vcmp.lt.s32.totalorder %v183, 0
    %v341 = vand.u32 %v183, 2139095040
    %v342 = vshrl.u32 %v341, 23
    %v343 = vsub.s32 %v342, 127
    %v344 = vand.u32 2147483647, %v183
    %v345 = vand.u32 %v344, 8388607
    %v346 = vor.u32 %v345, 8388608
    %v347 = vsub.s32 0, %v346
    %v348 = vadd.s32 %v343, 1
    %vm349 = vcmp.gt.s32.totalorder %v348, 0
    %v350 = vsel %vm349, %v348, 0
    %v351 = vshrl.u32 %v350, 5
    %v352 = vand.u32 %v350, 31
    %v353 = vsub.s32 32, %v352
    %v354 = vshrl.u32 683565275, %v353
    %v355 = vshll.u32 683565275, %v352
    %v356 = vshrl.u32 2475754826, %v353
    %v357 = vor.u32 %v355, %v356
    %v358 = vshll.u32 2475754826, %v352
    %v359 = vshrl.u32 2131351028, %v353
    %v360 = vor.u32 %v358, %v359
    %v361 = vshll.u32 2131351028, %v352
    %v362 = vshrl.u32 2102212464, %v353
    %v363 = vor.u32 %v361, %v362
    %v364 = vshll.u32 2102212464, %v352
    %v365 = vshrl.u32 920167782, %v353
    %v366 = vor.u32 %v364, %v365
    %v367 = vshll.u32 920167782, %v352
    %v368 = vshrl.u32 1326507024, %v353
    %v369 = vor.u32 %v367, %v368
    %vm370 = vcmp.lt.s32.totalorder %v351, 1
    %vm371 = vcmp.lt.s32.totalorder %v351, 2
    %vm372 = vcmp.lt.s32.totalorder %v351, 3
    %vm373 = vcmp.lt.s32.totalorder %v351, 4
    %v374 = vsel %vm370, %v354, %v357
    %v375 = vsel %vm373, %v363, 2102212464
    %v376 = vsel %vm372, %v360, %v375
    %v377 = vsel %vm371, %v374, %v376
    %v378 = vsel %vm370, %v357, %v360
    %v379 = vsel %vm373, %v366, 920167782
    %v380 = vsel %vm372, %v363, %v379
    %v381 = vsel %vm371, %v378, %v380
    %v382 = vsel %vm370, %v360, %v363
    %v383 = vsel %vm373, %v369, 1326507024
    %v384 = vsel %vm372, %v366, %v383
    %v385 = vsel %vm371, %v382, %v384
    %v386 = vshll.u32 %v346, 8
    %v387 = vand.u32 %v386, 65535
    %v388 = vshrl.u32 %v386, 16
    %v389 = vand.u32 %v385, 65535
    %v390 = vshrl.u32 %v385, 16
    %v391 = vmul.u32 %v387, %v389
    %v392 = vmul.u32 %v387, %v390
    %v393 = vmul.u32 %v388, %v389
    %v394 = vmul.u32 %v388, %v390
    %v395 = vshll.u32 %v392, 16
    %v396 = vshrl.u32 %v392, 16
    %v397 = vshll.u32 %v393, 16
    %v398 = vshrl.u32 %v393, 16
    %vm399 = vc.u32 %v391, %v395
    %v400 = vsel %vm399, 1, 0
    %v401 = vadd.s32 %v391, %v395
    %v402 = vadd.s32 %v394, %v400
    %vm403 = vc.u32 %v401, %v397
    %v404 = vsel %vm403, 1, 0
    %v405 = vadd.s32 %v401, %v397
    %v406 = vadd.s32 %v402, %v404
    %v407 = vadd.s32 %v406, %v396
    %v408 = vadd.s32 %v407, %v398
    %v409 = vand.u32 %v386, 65535
    %v410 = vshrl.u32 %v386, 16
    %v411 = vand.u32 %v381, 65535
    %v412 = vshrl.u32 %v381, 16
    %v413 = vmul.u32 %v409, %v411
    %v414 = vmul.u32 %v409, %v412
    %v415 = vmul.u32 %v410, %v411
    %v416 = vmul.u32 %v410, %v412
    %v417 = vshll.u32 %v414, 16
    %v418 = vshrl.u32 %v414, 16
    %v419 = vshll.u32 %v415, 16
    %v420 = vshrl.u32 %v415, 16
    %vm421 = vc.u32 %v413, %v417
    %v422 = vsel %vm421, 1, 0
    %v423 = vadd.s32 %v413, %v417
    %v424 = vadd.s32 %v416, %v422
    %vm425 = vc.u32 %v423, %v419
    %v426 = vsel %vm425, 1, 0
    %v427 = vadd.s32 %v423, %v419
    %v428 = vadd.s32 %v424, %v426
    %v429 = vadd.s32 %v428, %v418
    %v430 = vadd.s32 %v429, %v420
    %v431 = vmul.u32 %v386, %v377
    %v432 = vadd.s32 %v408, %v427
    %vm433 = vc.u32 %v408, %v427
    %v434 = vadd.s32 %v430, 1
    %v435 = vsel %vm433, %v434, %v430
    %v436 = vadd.s32 %v431, %v435
    %v437 = vadd.s32 %v436, 536870912
    %v438 = vshrl.u32 %v437, 30
    %v439 = vshll.u32 %v438, 30
    %v440 = vsub.s32 %v436, %v439
    %vm441 = vcmp.lt.s32.totalorder %v440, 0
    %v442 = vsub.s32 0, %v440
    %v443 = vsel %vm441, %v442, %v440
    %v444 = vclz %v443
    %v445 = vsub.s32 %v444, 2
    %vm446 = vcmp.gt.s32.totalorder 0, %v445
    %v447 = vsel %vm446, 0, %v445
    %v448 = vsub.s32 32, %v447
    %v449 = vshll.u32 %v440, %v447
    %v450 = vshrl.u32 %v432, %v448
    %v451 = vor.u32 %v449, %v450
    %v452 = vsub.s32 4294967266, %v447
    %v453 = vadd.s32 %v452, 127
    %v454 = vshll.u32 %v453, 23
    %v455 = vor.u32 4788187, %v454
    %v456 = vand.u32 2147483647, %v455
    %v458 = vcvt.s32.f32 %v451
    %v459 = vmul.f32 %v458, %v456
    %v460 = vxor.u32 %v459, 2147483648
    %v461 = vsel %vm340, %v460, %v459
    %v462 = vsub.s32 4, %v438
    %v463 = vsel %vm340, %v462, %v438
    %v464 = vsel %vm339, %v183, %v461
    %v465 = vsel %vm339, 0, %v463
    %v466 = vmul.f32 %v464, %v464
    %v467 = vmul.f32 %v466, -0.001358992
    %v468 = vadd.f32 %v467, 0.041655596
    %v469 = vmul.f32 %v466, %v468
    %v470 = vadd.f32 %v469, -0.4999988
    %v471 = vmul.f32 %v466, %v470
    %v472 = vadd.f32 1.0, %v471
    %v473 = vmul.f32 %v464, %v464
    %v474 = vmul.f32 %v473, -0.00019511016
    %v475 = vadd.f32 %v474, 0.008332121
    %v476 = vmul.f32 %v473, %v475
    %v477 = vadd.f32 %v476, -0.16666654
    %v478 = vmul.f32 %v473, %v477
    %v479 = vadd.f32 %v478, 1.0
    %v480 = vmul.f32 %v479, %v464
    %vm481 = vweird.f32 %v183
    %v482 = vand.u32 %v465, 3
    %vm483 = vcmp.lt.s32.totalorder %v482, 2
    %vm484 = vcmp.eq.s32.totalorder %v482, 0
    %v485 = vxor.u32 %v480, 2147483648
    %v486 = vsel %vm484, %v472, %v485
    %vm487 = vcmp.eq.s32.totalorder %v482, 2
    %v488 = vxor.u32 %v472, 2147483648
    %v489 = vsel %vm487, %v488, %v480
    %v490 = vsel %vm483, %v486, %v489
    %v491 = vsel %vm481, nan, %v490
    %v492 = vmul.f32 %v169, %v337
    %v493 = vmul.f32 %v181, %v491
    %v494 = vld [vmem:[#allocation3] sm:$0xff]
    %v495 = vld [vmem:[#allocation3 + $0x8] sm:$0xff]
    %v496 = vmul.f32 %v492, 0.1
    %v497 = vmul.f32 %v493, 0.1
    %v498 = vadd.f32 %v496, 1.0
    %v499 = vadd.f32 %v497, 1.0
    %v500 = vmul.f32 %v494, %v498
    %v501 = vmul.f32 %v495, %v499
    %502 = vst [vmem:[#allocation6] sm:$0xff] %v500
    %503 = vst [vmem:[#allocation6 + $0x8] sm:$0xff] %v501
    // Predicated region
    $region14: #{tpu_custom_call.1} parent=1 // pred_check
      _
    $region15: #{tpu_custom_call.1} parent=1 // pred_check_branch
      %505 = sbr.rel (0) target = $region17
    $region16: #{tpu_custom_call.1} parent=1 // pred_region
      %507 = vsyncadd [#allocation5], 0
      %s508 = sshll.u32 [#allocation6], 4
      %s509 = int_to_ptr.vmem [resolvable:$true] %s508
      %s510 = sshll.u32 %s2, 4
      %s511 = int_to_ptr.hbm [resolvable:$true] %s510
      %516 = dma.vmem_to_hbm [thread:$0]  %s509, 256, %s511, [#allocation5], 128, 128, 8
    $region17: #{tpu_custom_call.1} parent=1 // pred_fallthru
      _
    // Predicated region
    $region18: #{tpu_custom_call.1} parent=1 // pred_check
      _
    $region19: #{tpu_custom_call.1} parent=1 // pred_check_branch
      %518 = sbr.rel (0) target = $region21
    $region20: #{tpu_custom_call.1} parent=1 // pred_region
      %520 = dma.done [#allocation5], 256
    $region21: #{tpu_custom_call.1} parent=1 // pred_fallthru
      _
    %521 = vsyncpa [#allocation4], 1
    %522 = vsyncpa [#allocation5], 1

</llo_original>
